<compile_context>
chip_gen: v5e
topology: v5e:2x2
jax: 0.10.0
libtpu: 0.0.40
codegen_flags: <defaults>
</compile_context>

<pallas_src>
import functools

import jax
import jax.numpy as jnp
import numpy as np
from jax.experimental import pallas as pl
from jax.experimental.pallas import tpu as pltpu


# --------------------------------------------------------------------------- #
# Single-pass kernel: TB whole images per grid step.
# --------------------------------------------------------------------------- #
def coord_attn_kernel(x_ref, *refs, inv_hw):
    """refs = (*w_refs, b_ref, o_ref); w_refs is 1 folded or 2 low-rank mats."""
    o_ref = refs[-1]
    b_ref = refs[-2]
    w_refs = refs[:-2]

    x = x_ref[...]                                            # (TB, C, HW)
    mean = jnp.sum(x, axis=2, dtype=jnp.float32) * inv_hw     # (TB, C) f32
    mx = jnp.max(x, axis=2).astype(jnp.float32)               # (TB, C) f32
    z = mean + mx
    for w_ref in w_refs:                                      # negligible on MXU
        z = jnp.dot(z, w_ref[...], preferred_element_type=jnp.float32)
    gate = jax.nn.sigmoid(z + b_ref[...]).astype(x.dtype)     # (TB, C)

    # (TB, C, 1) * (TB, C, HW): lane-broadcast multiply, no materialized temp.
    o_ref[...] = (gate[:, :, None] * x).astype(o_ref.dtype)


# --------------------------------------------------------------------------- #
# Fallback kernels: HW (lane) axis tiled when one image exceeds the budget.
# --------------------------------------------------------------------------- #
def _pool_gate_kernel(x_ref, m_ref, *rest, inv_hw, n_w):
    """rest = (*w_refs, b_ref, gate_ref, sum_sc, max_sc)."""
    w_refs = rest[:n_w]
    b_ref, gate_ref, sum_sc, max_sc = rest[n_w:]
    j = pl.program_id(1)

    @pl.when(j == 0)
    def _():
        sum_sc[...] = jnp.zeros_like(sum_sc)
        max_sc[...] = jnp.full_like(max_sc, -jnp.inf)

    x = x_ref[...]                                            # (1, C, LT)
    sum_sc[...] += jnp.sum(x, axis=2, dtype=jnp.float32)
    # m_ref is 0 on valid lanes, -inf on padded lanes (additive mask row).
    max_sc[...] = jnp.maximum(
        max_sc[...], jnp.max(x.astype(jnp.float32) + m_ref[...], axis=2))

    @pl.when(j == pl.num_programs(1) - 1)
    def _():
        z = sum_sc[...] * inv_hw + max_sc[...]                # (1, C)
        for w_ref in w_refs:
            z = jnp.dot(z, w_ref[...], preferred_element_type=jnp.float32)
        g = jax.nn.sigmoid(z + b_ref[...])                    # (1, C)
        gate_ref[...] = g[None]                               # (1, 1, C)


def _scale_kernel(x_ref, g_ref, o_ref):
    x = x_ref[...]                                            # (1, C, LT)
    g = jnp.swapaxes(g_ref[...], 1, 2)                        # (1, C, 1) tiny relayout
    o_ref[...] = (g.astype(x.dtype) * x).astype(o_ref.dtype)


# --------------------------------------------------------------------------- #
# Wrapper
# --------------------------------------------------------------------------- #
def _vmem_capacity_bytes():
    try:
        return int(pltpu.get_tpu_info().vmem_capacity_bytes)
    except Exception:
        return 128 << 20  # v5e/v6e default


def _single_pass(x_r, weights, b_row, B, C, H, W, HW, inv_hw,
                 per_img, wbytes, target_block_bytes, vmem_cap):
    TB = max(1, min(B, target_block_bytes // per_img))
    # >= min(B, 4) grid steps: keeps input/output DMAs overlapped and lets the
    # "parallel" batch axis actually shard across v7x's two TensorCores.
    TB = max(1, min(TB, pl.cdiv(B, min(B, 4))))
    n_steps = pl.cdiv(B, TB)                     # ragged last block is fine
    block_bytes = TB * per_img
    vmem_limit = int(min(int(vmem_cap * 0.9),
                         max(16 << 20, 4 * block_bytes + wbytes + (2 << 20))))

    cost = pl.CostEstimate(
        flops=int(3 * B * C * HW + 2 * B * sum(int(w.size) for w in weights)),
        transcendentals=int(B * C),
        bytes_accessed=int(2 * B * per_img + wbytes),
    )

    w_specs = [pl.BlockSpec(tuple(w.shape), lambda i: (0, 0)) for w in weights]

    out = pl.pallas_call(
        functools.partial(coord_attn_kernel, inv_hw=inv_hw),
        out_shape=jax.ShapeDtypeStruct((B, C, HW), x_r.dtype),
        grid_spec=pltpu.PrefetchScalarGridSpec(
            num_scalar_prefetch=0,
            grid=(n_steps,),
            in_specs=[pl.BlockSpec((TB, C, HW), lambda i: (i, 0, 0))]
                     + w_specs
                     + [pl.BlockSpec((1, C), lambda i: (0, 0))],
            out_specs=pl.BlockSpec((TB, C, HW), lambda i: (i, 0, 0)),
        ),
        compiler_params=pltpu.CompilerParams(
            dimension_semantics=("parallel",),
            vmem_limit_bytes=vmem_limit,
        ),
        cost_estimate=cost,
    )(x_r, *weights, b_row)

    return out.reshape(B, C, H, W)


def _two_pass(x_r, weights, b_row, B, C, H, W, HW, inv_hw,
              itemsize, wbytes, target_block_bytes, vmem_cap):
    # Lane tile: multiple of 128 keeping one (C, LT) block near the budget.
    LT = max(128, (target_block_bytes // (C * itemsize)) // 128 * 128)
    LT = min(LT, pl.cdiv(HW, 128) * 128)
    n_lt = pl.cdiv(HW, LT)
    HWp = n_lt * LT

    blk = C * LT * itemsize
    vmem_limit = int(min(int(vmem_cap * 0.9),
                         max(16 << 20, 5 * blk + wbytes + (2 << 20))))

    # Pass 1 (reduction) needs clean data in the padded lane tail, so pad once.
    # TODO(synk): mask only the final partial 128-lane group instead of padding.
    xp = x_r if HWp == HW else jnp.pad(x_r, ((0, 0), (0, 0), (0, HWp - HW)))
    lane_mask = jnp.where(jnp.arange(HWp) < HW, 0.0,
                          -jnp.inf).astype(jnp.float32).reshape(1, 1, HWp)

    n_w = len(weights)
    w_specs = [pl.BlockSpec(tuple(w.shape), lambda b, j: (0, 0)) for w in weights]

    gate = pl.pallas_call(
        functools.partial(_pool_gate_kernel, inv_hw=inv_hw, n_w=n_w),
        out_shape=jax.ShapeDtypeStruct((B, 1, C), jnp.float32),
        grid_spec=pltpu.PrefetchScalarGridSpec(
            num_scalar_prefetch=0,
            grid=(B, n_lt),
            in_specs=[pl.BlockSpec((1, C, LT), lambda b, j: (b, 0, j)),
                      pl.BlockSpec((1, 1, LT), lambda b, j: (0, 0, j))]
                     + w_specs
                     + [pl.BlockSpec((1, C), lambda b, j: (0, 0))],
            out_specs=pl.BlockSpec((1, 1, C), lambda b, j: (b, 0, 0)),
            scratch_shapes=[pltpu.VMEM((1, C), jnp.float32),
                            pltpu.VMEM((1, C), jnp.float32)],
        ),
        compiler_params=pltpu.CompilerParams(
            dimension_semantics=("parallel", "arbitrary"),
            vmem_limit_bytes=vmem_limit,
        ),
    )(xp, lane_mask, *weights, b_row)

    out = pl.pallas_call(
        _scale_kernel,
        out_shape=jax.ShapeDtypeStruct((B, C, HW), x_r.dtype),
        grid_spec=pltpu.PrefetchScalarGridSpec(
            num_scalar_prefetch=0,
            grid=(B, n_lt),
            in_specs=[pl.BlockSpec((1, C, LT), lambda b, j: (b, 0, j)),
                      pl.BlockSpec((1, 1, C), lambda b, j: (b, 0, 0))],
            out_specs=pl.BlockSpec((1, C, LT), lambda b, j: (b, 0, j)),
        ),
        compiler_params=pltpu.CompilerParams(
            dimension_semantics=("parallel", "parallel"),
            vmem_limit_bytes=vmem_limit,
        ),
    )(x_r, gate)

    return out.reshape(B, C, H, W)


def coordinate_attention(x, w1_full, b1, w2_full, b2):
    """x: (B, C, H, W) NCHW, any float dtype (f32 / bf16)."""
    B, C, H, W = x.shape
    ksize = w1_full.shape[-1]
    kc = ksize // 2
    HW = H * W
    inv_hw = 1.0 / float(HW)

    # -- exact 1x1 reduction of the two convs (center tap only) ---------------
    w1c = w1_full[:, :, kc, kc].astype(jnp.float32)           # (mid, C)
    w2c = w2_full[:, :, kc, kc].astype(jnp.float32)           # (C, mid)
    b_row = (2.0 * (w2c @ b1.astype(jnp.float32)
                    + b2.astype(jnp.float32))).reshape(1, C)
    if C <= 256:
        weights = ((w2c @ w1c).T,)            # folded (C, C): pooled @ W
    else:
        weights = (w1c.T, w2c.T)              # low-rank (C, mid), (mid, C)
    wbytes = int(sum(int(w.size) for w in weights) * 4 + C * 4)

    x_r = x.reshape(B, C, HW)
    itemsize = x_r.dtype.itemsize
    per_img = C * HW * itemsize

    # -- generation-aware block budget -----------------------------------------
    vmem_cap = _vmem_capacity_bytes()
    target_block_bytes = max(1 << 20, vmem_cap // 16)   # ~4 MiB v7x, ~8 MiB v5e/v6e

    if per_img <= target_block_bytes:
        return _single_pass(x_r, weights, b_row, B, C, H, W, HW, inv_hw,
                            per_img, wbytes, target_block_bytes, vmem_cap)
    return _two_pass(x_r, weights, b_row, B, C, H, W, HW, inv_hw,
                     itemsize, wbytes, target_block_bytes, vmem_cap)


# --------------------------------------------------------------------------- #
# Pure-JAX reference (mirrors the PyTorch forward, unfolded).
# --------------------------------------------------------------------------- #
def reference_forward(x, w1_full, b1, w2_full, b2):
    ksize = w1_full.shape[-1]
    kc = ksize // 2
    w1c = w1_full[:, :, kc, kc]
    w2c = w2_full[:, :, kc, kc]
    avg = jnp.mean(x, axis=(2, 3))   # (B, C)
    mx = jnp.max(x, axis=(2, 3))     # (B, C)
    a2 = (avg @ w1c.T + b1) @ w2c.T + b2
    m2 = (mx @ w1c.T + b1) @ w2c.T + b2
    gate = jax.nn.sigmoid(a2 + m2)
    return gate[:, :, None, None] * x


if __name__ == "__main__":
    # reduction=32 requires in_channels >= 32, so use C=64 -> mid=2.
    B, C, H, W = 2, 64, 16, 16
    reduction = 32
    ksize = 3
    mid = C // reduction

    key = jax.random.PRNGKey(0)
    kx, kw1, kb1, kw2, kb2 = jax.random.split(key, 5)

    x = jax.random.normal(kx, (B, C, H, W), dtype=jnp.float32)

    # Deterministic Conv2d-style init (uniform in +/- 1/sqrt(fan_in)).
    fan1 = C * ksize * ksize
    fan2 = mid * ksize * ksize
    w1_full = jax.random.uniform(kw1, (mid, C, ksize, ksize), jnp.float32,
                                 -1.0 / np.sqrt(fan1), 1.0 / np.sqrt(fan1))
    b1 = jax.random.uniform(kb1, (mid,), jnp.float32,
                            -1.0 / np.sqrt(fan1), 1.0 / np.sqrt(fan1))
    w2_full = jax.random.uniform(kw2, (C, mid, ksize, ksize), jnp.float32,
                                 -1.0 / np.sqrt(fan2), 1.0 / np.sqrt(fan2))
    b2 = jax.random.uniform(kb2, (C,), jnp.float32,
                            -1.0 / np.sqrt(fan2), 1.0 / np.sqrt(fan2))

    out = coordinate_attention(x, w1_full, b1, w2_full, b2)
    out = jax.block_until_ready(out)

    ref = reference_forward(x, w1_full, b1, w2_full, b2)
    np.testing.assert_allclose(np.asarray(out), np.asarray(ref),
                               rtol=1e-5, atol=1e-5)
    print("KERNEL_OK")
</pallas_src>

<mosaic_0001>
module attributes {stable_mosaic.version = 11 : i64} {
  func.func @coord_attn_kernel(%arg0: i32, %arg1: memref<1x64x256xf32, #tpu.memory_space<vmem>>, %arg2: memref<64x64xf32, #tpu.memory_space<vmem>>, %arg3: memref<1x64xf32, #tpu.memory_space<vmem>>, %arg4: memref<1x64x256xf32, #tpu.memory_space<vmem>>) attributes {dimension_semantics = [#tpu.dimension_semantics<parallel>], iteration_bounds = array<i64: 2>, scalar_prefetch = 0 : i64, scratch_operands = 0 : i64, tpu.core_type = #tpu.core_type<tc>, window_params = [{transform_indices = @transform_0, window_bounds = array<i64: 1, 64, 256>}, {pipeline_mode = #tpu.pipeline_mode<synchronous>, transform_indices = @transform_1, window_bounds = array<i64: 64, 64>}, {pipeline_mode = #tpu.pipeline_mode<synchronous>, transform_indices = @transform_2, window_bounds = array<i64: 1, 64>}, {transform_indices = @transform_3, window_bounds = array<i64: 1, 64, 256>}]} {
    %c0 = arith.constant 0 : index
    %c0_0 = arith.constant 0 : index
    %c0_1 = arith.constant 0 : index
    %0 = vector.load %arg1[%c0, %c0_0, %c0_1] : memref<1x64x256xf32, #tpu.memory_space<vmem>>, vector<1x64x256xf32>
    %cst = arith.constant dense<0.000000e+00> : vector<1x64xf32>
    %1 = vector.multi_reduction <add>, %0, %cst [2] : vector<1x64x256xf32> to vector<1x64xf32>
    %cst_2 = arith.constant 3.906250e-03 : f32
    %2 = vector.broadcast %cst_2 : f32 to vector<1x64xf32>
    %3 = arith.mulf %1, %2 : vector<1x64xf32>
    %cst_3 = arith.constant dense<0xFF800000> : vector<1x64xf32>
    %4 = vector.multi_reduction <maximumf>, %0, %cst_3 [2] : vector<1x64x256xf32> to vector<1x64xf32>
    %5 = arith.addf %3, %4 : vector<1x64xf32>
    %c0_4 = arith.constant 0 : index
    %c0_5 = arith.constant 0 : index
    %6 = vector.load %arg2[%c0_4, %c0_5] : memref<64x64xf32, #tpu.memory_space<vmem>>, vector<64x64xf32>
    %cst_6 = arith.constant dense<0.000000e+00> : vector<1x64xf32>
    %7 = tpu.matmul %5, %6, %cst_6 {dimension_numbers = #tpu.dot_dimension_numbers<[1], [0], [0], [1], [0, 0, 1, 1], [], []>} : vector<1x64xf32>, vector<64x64xf32>, vector<1x64xf32> -> vector<1x64xf32>
    %c0_7 = arith.constant 0 : index
    %c0_8 = arith.constant 0 : index
    %8 = vector.load %arg3[%c0_7, %c0_8] : memref<1x64xf32, #tpu.memory_space<vmem>>, vector<1x64xf32>
    %9 = arith.addf %7, %8 : vector<1x64xf32>
    %10 = arith.negf %9 : vector<1x64xf32>
    %11 = math.exp %10 : vector<1x64xf32>
    %cst_9 = arith.constant 1.000000e+00 : f32
    %12 = vector.broadcast %cst_9 : f32 to vector<1x64xf32>
    %13 = arith.addf %12, %11 : vector<1x64xf32>
    %14 = arith.divf %12, %13 : vector<1x64xf32>
    %15 = vector.shape_cast %14 : vector<1x64xf32> to vector<1x64x1xf32>
    %16 = vector.broadcast %15 : vector<1x64x1xf32> to vector<1x64x256xf32>
    %17 = arith.mulf %16, %0 : vector<1x64x256xf32>
    %c0_10 = arith.constant 0 : index
    %c0_11 = arith.constant 0 : index
    %c0_12 = arith.constant 0 : index
    %18 = vector.load %arg4[%c0_10, %c0_11, %c0_12] : memref<1x64x256xf32, #tpu.memory_space<vmem>>, vector<1x64x256xf32>
    tpu.vector_store %arg4[%c0_10, %c0_11, %c0_12], %17 {strides = array<i32>} : memref<1x64x256xf32, #tpu.memory_space<vmem>>, vector<1x64x256xf32>,
    return
  }
  func.func @transform_0(%arg0: i32) -> (i32, i32, i32) {
    %c0_i32 = arith.constant 0 : i32
    %c0_i32_0 = arith.constant 0 : i32
    %c0_i32_1 = arith.constant 0 : i32
    return %arg0, %c0_i32, %c0_i32_0 : i32, i32, i32
  }
  func.func @transform_1(%arg0: i32) -> (i32, i32) {
    %c0_i32 = arith.constant 0 : i32
    %c0_i32_0 = arith.constant 0 : i32
    %c0_i32_1 = arith.constant 0 : i32
    return %c0_i32, %c0_i32_0 : i32, i32
  }
  func.func @transform_2(%arg0: i32) -> (i32, i32) {
    %c0_i32 = arith.constant 0 : i32
    %c0_i32_0 = arith.constant 0 : i32
    %c0_i32_1 = arith.constant 0 : i32
    return %c0_i32, %c0_i32_0 : i32, i32
  }
  func.func @transform_3(%arg0: i32) -> (i32, i32, i32) {
    %c0_i32 = arith.constant 0 : i32
    %c0_i32_0 = arith.constant 0 : i32
    %c0_i32_1 = arith.constant 0 : i32
    return %arg0, %c0_i32, %c0_i32_0 : i32, i32, i32
  }
}

</mosaic_0001>

<llo_original>
// kernel: tpu_custom_call.1
$region0: #{tpu_custom_call.1}
  #allocation0 [shape = 'u32[]', space=smem, size = 0x4, offset = 0x4, fixed_abs, tag = 'smem constant byte address 0x4 - core index']
  #allocation1 [shape = 'u32[72,128]{1,0:T(1,128)}', space=vmem, size = 0x9000, scoped, tag = 'internal scratch']
  %s0 = inlined_call_operand.hbm [shape: f32[2,64,256], index: 0, kind: input, shape index: {}]
  %s1 = inlined_call_operand.hbm [shape: f32[64,64], index: 1, kind: input, shape index: {}]
  %s2 = inlined_call_operand.vmem [shape: f32[1,64], index: 2, kind: input, shape index: {}]
  %s3 = inlined_call_operand.hbm [shape: f32[2,64,256], index: 3, kind: output, shape index: {}]
  %s4 = sld [smem:[#allocation0]]
  $region53: #{tpu_custom_call.1} parent=0
    _
  %s6 = ssub.s32 1, %s4
  %s7 = scalar_select 0, %s6, %s4
  $region1: #{tpu_custom_call.1} parent=0
    #allocation2 [shape = 'u8[131072]{0}', space=vmem, size = 0x20000, scoped, tag = 'input window, operand 0']
    #allocation3 [shape = 's32[2]{0}', space=sflag, size = 0x8, scoped, tag = 'scoped memory for tpu_custom_call.1']
    #allocation4 [shape = 's32[2]{0}', space=sflag, size = 0x8, scoped, tag = 'scoped memory for tpu_custom_call.1']
    #allocation5 [shape = 'u8[32768]{0}', space=vmem, size = 0x8000, scoped, tag = 'input window, operand 1, single buffered']
    #allocation6 [shape = 's32[1]{0}', space=sflag, size = 0x4, scoped, tag = 'scoped memory for tpu_custom_call.1']
    #allocation7 [shape = 'u8[131072]{0}', space=vmem, size = 0x20000, scoped, tag = 'output window, operand 0']
    %8 = vsyncpa [#allocation3], 0
    %s9 = scalar_lea.sflag [#allocation3], 1
    %10 = vsyncpa %s9, 0
    %11 = vsyncpa [#allocation6], 0
    %12 = vsyncpa [#allocation4], 0
    %s13 = scalar_lea.sflag [#allocation4], 1
    %14 = vsyncpa %s13, 0
    loop: start=0, step=1, limit=4
    $region2: #{tpu_custom_call.1} parent=1 // loop_pre_header
      _
    $region3: #{tpu_custom_call.1} parent=1 // loop_header
      %s16 = sphi 0, %s20
      %p17 = scmp.ge.s32.totalorder %s16, 4
      %s26 = sphi 0, %s28
      %s29 = sphi 0, %s26
      %s30 = sphi 0, %s29
      %s46 = sphi 0, %s30
      %s50 = sphi 0, %s50
      %s52 = sphi 0, %s50
      %s53 = sphi 0, %s52
      %s67 = sphi 0, %s53
      %s71 = sphi 0, %s71
      %s73 = sphi 0, %s71
      %s74 = sphi 0, %s73
      %s88 = sphi 0, %s74
      %s94 = sphi 0, %s96
      %s97 = sphi 0, %s94
      %s98 = sphi 0, %s97
      %s114 = sphi 0, %s98
    $region4: #{tpu_custom_call.1} parent=1 // loop_header_branch
      %19 = sbr.rel (%p17) target = $region8
    $region5: #{tpu_custom_call.1} parent=1 // loop_body
      %s21 = ssub.s32 %s16, 1
      %s22 = ssub.s32 %s16, 2
      %s23 = sadd.s32 %s16, 1
      %s24 = ssub.s32 %s16, %s23
      %p25 = scmp.eq.s32.totalorder %s24, 0
      %s27 = sadd.s32 %s26, 1
      %s28 = scalar_select %p25, %s26, %s27
      %p31 = pneg %p25
      %p32 = scmp.eq.s32.totalorder %s16, 1
      %p33 = por %p31, %p32
      %p34 = scmp.ne.s32.totalorder %s26, %s29
      %p35 = scmp.eq.s32.totalorder %s16, 0
      %p36 = por %p34, %p35
      %p37 = scmp.ne.s32.totalorder %s26, %s29
      %p38 = scmp.eq.s32.totalorder %s21, 1
      %p39 = por %p37, %p38
      %p40 = scmp.ne.s32.totalorder %s29, %s30
      %p41 = scmp.eq.s32.totalorder %s21, 0
      %p42 = por %p40, %p41
      %p43 = scmp.ne.s32.totalorder %s29, %s30
      %p44 = scmp.eq.s32.totalorder %s22, 1
      %p45 = por %p43, %p44
      %p47 = scmp.ne.s32.totalorder %s30, %s46
      %p48 = scmp.eq.s32.totalorder %s22, 0
      %p49 = por %p47, %p48
      %s51 = sadd.s32 %s50, 1
      %p54 = scmp.eq.s32.totalorder %s16, 1
      %p55 = scmp.ne.s32.totalorder %s50, %s52
      %p56 = scmp.eq.s32.totalorder %s16, 0
      %p57 = por %p55, %p56
      %p58 = scmp.ne.s32.totalorder %s50, %s52
      %p59 = scmp.eq.s32.totalorder %s21, 1
      %p60 = por %p58, %p59
      %p61 = scmp.ne.s32.totalorder %s52, %s53
      %p62 = scmp.eq.s32.totalorder %s21, 0
      %p63 = por %p61, %p62
      %p64 = scmp.ne.s32.totalorder %s52, %s53
      %p65 = scmp.eq.s32.totalorder %s22, 1
      %p66 = por %p64, %p65
      %p68 = scmp.ne.s32.totalorder %s53, %s67
      %p69 = scmp.eq.s32.totalorder %s22, 0
      %p70 = por %p68, %p69
      %s72 = sadd.s32 %s71, 1
      %p75 = scmp.eq.s32.totalorder %s16, 1
      %p76 = scmp.ne.s32.totalorder %s71, %s73
      %p77 = scmp.eq.s32.totalorder %s16, 0
      %p78 = por %p76, %p77
      %p79 = scmp.ne.s32.totalorder %s71, %s73
      %p80 = scmp.eq.s32.totalorder %s21, 1
      %p81 = por %p79, %p80
      %p82 = scmp.ne.s32.totalorder %s73, %s74
      %p83 = scmp.eq.s32.totalorder %s21, 0
      %p84 = por %p82, %p83
      %p85 = scmp.ne.s32.totalorder %s73, %s74
      %p86 = scmp.eq.s32.totalorder %s22, 1
      %p87 = por %p85, %p86
      %p89 = scmp.ne.s32.totalorder %s74, %s88
      %p90 = scmp.eq.s32.totalorder %s22, 0
      %p91 = por %p89, %p90
      %s92 = ssub.s32 %s16, %s23
      %p93 = scmp.eq.s32.totalorder %s92, 0
      %s95 = sadd.s32 %s94, 1
      %s96 = scalar_select %p93, %s94, %s95
      %p99 = pneg %p93
      %p100 = scmp.eq.s32.totalorder %s16, 1
      %p101 = por %p99, %p100
      %p102 = scmp.ne.s32.totalorder %s94, %s97
      %p103 = scmp.eq.s32.totalorder %s16, 0
      %p104 = por %p102, %p103
      %p105 = scmp.ne.s32.totalorder %s94, %s97
      %p106 = scmp.eq.s32.totalorder %s21, 1
      %p107 = por %p105, %p106
      %p108 = scmp.ne.s32.totalorder %s97, %s98
      %p109 = scmp.eq.s32.totalorder %s21, 0
      %p110 = por %p108, %p109
      %p111 = scmp.ne.s32.totalorder %s97, %s98
      %p112 = scmp.eq.s32.totalorder %s22, 1
      %p113 = por %p111, %p112
      %p115 = scmp.ne.s32.totalorder %s98, %s114
      %p116 = scmp.eq.s32.totalorder %s22, 0
      %p117 = por %p115, %p116
      %p118 = scmp.le.s32.totalorder 1, %s16
      %p119 = scmp.lt.s32.totalorder %s16, 3
      %p120 = pnand %p118, %p119
      %p121 = pneg %p120
      // Predicated region
      $region9: #{tpu_custom_call.1} parent=5 // pred_check
        _
      $region10: #{tpu_custom_call.1} parent=5 // pred_check_branch
        %123 = sbr.rel (%p120) target = $region12
      $region11: #{tpu_custom_call.1} parent=5 // pred_region
        %s124 = ssub.s32 %s16, 1
        // Predicated region
        $region13: #{tpu_custom_call.1} parent=11 // pred_check
          %p125 = pneg %p63
        $region14: #{tpu_custom_call.1} parent=11 // pred_check_branch
          %127 = sbr.rel (%p125) target = $region16
        $region15: #{tpu_custom_call.1} parent=11 // pred_region
          %129 = vsyncadd [#allocation6], 0
          %s130 = sshll.u32 %s1, 4
          %s131 = int_to_ptr.hbm [resolvable:$true] %s130
          %s132 = sshll.u32 [#allocation5], 4
          %s133 = int_to_ptr.vmem [resolvable:$true] %s132
          %138 = dma.hbm_to_vmem [thread:$0]  %s131, 1024, %s133, [#allocation6], 128, 128, 8
        $region16: #{tpu_custom_call.1} parent=11 // pred_fallthru
          _
        // Predicated region
        $region17: #{tpu_custom_call.1} parent=11 // pred_check
          %p139 = pneg %p84
        $region18: #{tpu_custom_call.1} parent=11 // pred_check_branch
          %141 = sbr.rel (%p139) target = $region20
        $region19: #{tpu_custom_call.1} parent=11 // pred_region
          _
        $region20: #{tpu_custom_call.1} parent=11 // pred_fallthru
          _
      $region12: #{tpu_custom_call.1} parent=5 // pred_fallthru
        _
      %p142 = scmp.lt.s32.totalorder %s16, 2
      // Predicated region
      $region21: #{tpu_custom_call.1} parent=5 // pred_check
        %p143 = pneg %p142
      $region22: #{tpu_custom_call.1} parent=5 // pred_check_branch
        %145 = sbr.rel (%p143) target = $region24
      $region23: #{tpu_custom_call.1} parent=5 // pred_region
        // Predicated region
        $region25: #{tpu_custom_call.1} parent=23 // pred_check
          %p146 = pneg %p36
        $region26: #{tpu_custom_call.1} parent=23 // pred_check_branch
          %148 = sbr.rel (%p146) target = $region28
        $region27: #{tpu_custom_call.1} parent=23 // pred_region
          %s149 = sand.u32 %s26, 1
          %s150 = scalar_lea.sflag [#allocation3], %s149
          %s151 = sand.u32 %s26, 1
          %s152 = smul.addr %s151, 128
          %s153 = scalar_lea.vmem [#allocation2], %s152
          %155 = vsyncadd %s150, 0
          %s156 = smul.addr %s16, 16
          %s157 = smul.addr %s156, 8
          %s158 = scalar_lea.hbm %s0, %s157
          %s159 = sshll.u32 %s158, 4
          %s160 = int_to_ptr.hbm [resolvable:$true] %s159
          %s161 = sshll.u32 %s153, 4
          %s162 = int_to_ptr.vmem [resolvable:$true] %s161
          %167 = dma.hbm_to_vmem [thread:$0]  %s160, 2048, %s162, %s150, 256, 256, 16
        $region28: #{tpu_custom_call.1} parent=23 // pred_fallthru
          _
      $region24: #{tpu_custom_call.1} parent=5 // pred_fallthru
        _
      %p168 = scmp.le.s32.totalorder 1, %s16
      %p169 = scmp.lt.s32.totalorder %s16, 3
      %p170 = pnand %p168, %p169
      %p171 = pneg %p170
      // Predicated region
      $region29: #{tpu_custom_call.1} parent=5 // pred_check
        _
      $region30: #{tpu_custom_call.1} parent=5 // pred_check_branch
        %173 = sbr.rel (%p170) target = $region32
      $region31: #{tpu_custom_call.1} parent=5 // pred_region
        %s174 = ssub.s32 %s16, 1
        %s175 = sand.u32 %s29, 1
        %s176 = scalar_lea.sflag [#allocation3], %s175
        %s177 = sand.u32 %s29, 1
        %s178 = smul.addr %s177, 128
        %s179 = scalar_lea.vmem [#allocation2], %s178
        // Predicated region
        $region33: #{tpu_custom_call.1} parent=31 // pred_check
          %p180 = pneg %p42
        $region34: #{tpu_custom_call.1} parent=31 // pred_check_branch
          %182 = sbr.rel (%p180) target = $region36
        $region35: #{tpu_custom_call.1} parent=31 // pred_region
          %184 = dma.done %s176, 2048
        $region36: #{tpu_custom_call.1} parent=31 // pred_fallthru
          _
        // Predicated region
        $region37: #{tpu_custom_call.1} parent=31 // pred_check
          %p185 = pneg %p63
        $region38: #{tpu_custom_call.1} parent=31 // pred_check_branch
          %187 = sbr.rel (%p185) target = $region40
        $region39: #{tpu_custom_call.1} parent=31 // pred_region
          %189 = dma.done [#allocation6], 1024
        $region40: #{tpu_custom_call.1} parent=31 // pred_fallthru
          _
        %s190 = sand.u32 %s29, 1
        %s191 = scalar_lea.sflag [#allocation3], %s190
        %s192 = sand.u32 %s29, 1
        %s193 = smul.addr %s192, 128
        %s194 = scalar_lea.vmem [#allocation2], %s193
        %p195 = pneg %p42
        %p196 = pneg %p39
        %p197 = pneg %p63
        %p198 = pneg %p60
        %p199 = pneg %p84
        %p200 = pneg %p81
        %p201 = pneg %p110
        %p202 = pneg %p107
        %s203 = sand.u32 %s97, 1
        %s204 = scalar_lea.sflag [#allocation4], %s203
        %s205 = sand.u32 %s97, 1
        %s206 = smul.addr %s205, 128
        %s207 = scalar_lea.vmem [#allocation7], %s206
        %v208 = vld [vmem:[%s179] sm:$0xff]
        %v209 = vld [vmem:[%s179 + $0x8] sm:$0xff]
        %v210 = vld [vmem:[%s179 + $0x10] sm:$0xff]
        %v211 = vld [vmem:[%s179 + $0x18] sm:$0xff]
        %v212 = vld [vmem:[%s179 + $0x20] sm:$0xff]
        %v213 = vld [vmem:[%s179 + $0x28] sm:$0xff]
        %v214 = vld [vmem:[%s179 + $0x30] sm:$0xff]
        %v215 = vld [vmem:[%s179 + $0x38] sm:$0xff]
        %v216 = vld [vmem:[%s179 + $0x40] sm:$0xff]
        %v217 = vld [vmem:[%s179 + $0x48] sm:$0xff]
        %v218 = vld [vmem:[%s179 + $0x50] sm:$0xff]
        %v219 = vld [vmem:[%s179 + $0x58] sm:$0xff]
        %v220 = vld [vmem:[%s179 + $0x60] sm:$0xff]
        %v221 = vld [vmem:[%s179 + $0x68] sm:$0xff]
        %v222 = vld [vmem:[%s179 + $0x70] sm:$0xff]
        %v223 = vld [vmem:[%s179 + $0x78] sm:$0xff]
        %v224 = vadd.f32 %v208, %v209
        %225 = vadd.xlane.f32.xlu0 %v224
        %v226 = vpop.xlane.xlu0 %225
        %v227 = vadd.f32 %v210, %v211
        %228 = vadd.xlane.f32.xlu0 %v227
        %v229 = vpop.xlane.xlu0 %228
        %v230 = vadd.f32 %v212, %v213
        %231 = vadd.xlane.f32.xlu0 %v230
        %v232 = vpop.xlane.xlu0 %231
        %v233 = vadd.f32 %v214, %v215
        %234 = vadd.xlane.f32.xlu0 %v233
        %v235 = vpop.xlane.xlu0 %234
        %v236 = vadd.f32 %v216, %v217
        %237 = vadd.xlane.f32.xlu0 %v236
        %v238 = vpop.xlane.xlu0 %237
        %v239 = vadd.f32 %v218, %v219
        %240 = vadd.xlane.f32.xlu0 %v239
        %v241 = vpop.xlane.xlu0 %240
        %v242 = vadd.f32 %v220, %v221
        %243 = vadd.xlane.f32.xlu0 %v242
        %v244 = vpop.xlane.xlu0 %243
        %v245 = vadd.f32 %v222, %v223
        %246 = vadd.xlane.f32.xlu0 %v245
        %v247 = vpop.xlane.xlu0 %246
        %v248 = vmul.f32 %v226, 0.00390625
        %v249 = vmul.f32 %v229, 0.00390625
        %v250 = vmul.f32 %v232, 0.00390625
        %v251 = vmul.f32 %v235, 0.00390625
        %v252 = vmul.f32 %v238, 0.00390625
        %v253 = vmul.f32 %v241, 0.00390625
        %v254 = vmul.f32 %v244, 0.00390625
        %v255 = vmul.f32 %v247, 0.00390625
        %v256 = vmax.f32 %v208, %v209
        %257 = vmax.xlane.f32.xlu0 %v256
        %v258 = vpop.xlane.xlu0 %257
        %v259 = vmax.f32 %v210, %v211
        %260 = vmax.xlane.f32.xlu0 %v259
        %v261 = vpop.xlane.xlu0 %260
        %v262 = vmax.f32 %v212, %v213
        %263 = vmax.xlane.f32.xlu0 %v262
        %v264 = vpop.xlane.xlu0 %263
        %v265 = vmax.f32 %v214, %v215
        %266 = vmax.xlane.f32.xlu0 %v265
        %v267 = vpop.xlane.xlu0 %266
        %v268 = vmax.f32 %v216, %v217
        %269 = vmax.xlane.f32.xlu0 %v268
        %v270 = vpop.xlane.xlu0 %269
        %v271 = vmax.f32 %v218, %v219
        %272 = vmax.xlane.f32.xlu0 %v271
        %v273 = vpop.xlane.xlu0 %272
        %v274 = vmax.f32 %v220, %v221
        %275 = vmax.xlane.f32.xlu0 %v274
        %v276 = vpop.xlane.xlu0 %275
        %v277 = vmax.f32 %v222, %v223
        %278 = vmax.xlane.f32.xlu0 %v277
        %v279 = vpop.xlane.xlu0 %278
        %v280 = vadd.f32 %v248, %v258
        %v281 = vadd.f32 %v249, %v261
        %v282 = vadd.f32 %v250, %v264
        %v283 = vadd.f32 %v251, %v267
        %v284 = vadd.f32 %v252, %v270
        %v285 = vadd.f32 %v253, %v273
        %v286 = vadd.f32 %v254, %v276
        %v287 = vadd.f32 %v255, %v279
        %v288 = vld [vmem:[#allocation5] sm:$0xff]
        %v289 = vld [vmem:[#allocation5 + $0x8] sm:$0xff]
        %v290 = vld [vmem:[#allocation5 + $0x10] sm:$0xff]
        %v291 = vld [vmem:[#allocation5 + $0x18] sm:$0xff]
        %v292 = vld [vmem:[#allocation5 + $0x20] sm:$0xff]
        %v293 = vld [vmem:[#allocation5 + $0x28] sm:$0xff]
        %v294 = vld [vmem:[#allocation5 + $0x30] sm:$0xff]
        %v295 = vld [vmem:[#allocation5 + $0x38] sm:$0xff]
        %v296 = vld [vmem:[%s2] sm:$0x1]
        %v305 = vlaneseq
        %v306 = vand.u32 %v305, 127
        %v307 = vperm.slane %v280, %v306
        %v308 = vadd.s32 %v306, 4294967288
        %v309 = vperm.slane %v281, %v308
        %vm310 = vcmask 130112
        %v311 = vsel %vm310, %v309, %v307
        %v312 = vadd.s32 %v306, 4294967280
        %v313 = vperm.slane %v282, %v312
        %vm314 = vcmask 195712
        %v315 = vsel %vm314, %v313, %v311
        %v316 = vadd.s32 %v306, 4294967272
        %v317 = vperm.slane %v283, %v316
        %vm318 = vcmask 261312
        %v319 = vsel %vm318, %v317, %v315
        %v320 = vadd.s32 %v306, 4294967264
        %v321 = vperm.slane %v284, %v320
        %vm322 = vcmask 326912
        %v323 = vsel %vm322, %v321, %v319
        %v324 = vadd.s32 %v306, 4294967256
        %v325 = vperm.slane %v285, %v324
        %vm326 = vcmask 392512
        %v327 = vsel %vm326, %v325, %v323
        %v328 = vadd.s32 %v306, 4294967248
        %v329 = vperm.slane %v286, %v328
        %vm330 = vcmask 458112
        %v331 = vsel %vm330, %v329, %v327
        %v332 = vadd.s32 %v306, 4294967240
        %v333 = vperm.slane %v287, %v332
        %vm334 = vcmask 523712
        %v335 = vsel %vm334, %v333, %v331
        %vm336 = vcmask 523264
        %v337 = vsel %vm336, %v335, 0
        %339 = vmatpush.msra.mxu0 0.0
        %340 = vmatpush.msra.mxu0 0.0
        %341 = vmatpush.msra.mxu0 0.0
        %342 = vmatpush.msra.mxu0 0.0
        %343 = vmatpush.msra.mxu0 0.0
        %344 = vmatpush.msra.mxu0 0.0
        %345 = vmatpush.msra.mxu0 0.0
        %346 = vmatpush.msra.mxu0 0.0
        %347 = vmatpush.msra.mxu0 %v295
        %348 = vmatpush.msra.mxu0 %v294
        %349 = vmatpush.msra.mxu0 %v293
        %350 = vmatpush.msra.mxu0 %v292
        %351 = vmatpush.msra.mxu0 %v291
        %352 = vmatpush.msra.mxu0 %v290
        %353 = vmatpush.msra.mxu0 %v289
        %354 = vmatpush.msra.mxu0 %v288
        %355 = vmatmul.f32.gmra.mxu0 %v337
        %v356 = vpop.f32.mrf.mxu0
        %v357 = vadd.f32 %v296, %v356
        %358 = vdwg.mxu0
        %v359 = vxor.u32 %v357, 2147483648
        %v360 = vmul.f32 %v359, 1.442695
        %v361 = vpow.pop %v360
        %v362 = vadd.f32 %v361, 1.0
        %v363 = vrcp.pop %v362
        %v364 = vmul.f32 %v362, %v363
        %v365 = vsub.f32 1.0, %v364
        %v366 = vmul.f32 %v363, %v365
        %v367 = vadd.f32 %v363, %v366
        %vm368 = vweird.f32 %v362
        %vm369 = vweird.f32 %v363
        %vm370 = vmor %vm368, %vm369
        %v371 = vsel %vm370, %v363, %v367
        %v372 = vand.u32 2147483647, %v362
        %vm373 = vcmp.eq.f32.partialorder %v372, 8.507059e+37
        %v374 = vand.u32 %v362, 2147483648
        %v375 = vor.u32 1.1754944e-38, %v374
        %v376 = vsel %vm373, %v375, %v371
        %v377 = vmul.f32 1.0, %v376
        %v378 = vperm.slane %v377, 0
        %v379 = vlaneseq
        %v380 = vshrl.u32 %v379, 7
        %382 = vset.pattern.permute.xlu0 %v380
        %383 = vperm.xlu0 %382, %v378
        %v384 = vpop.permute.xlu0 %383
        %v385 = vlaneseq
        %v386 = vshrl.u32 %v385, 7
        %v387 = vadd.s32 %v386, 8
        %388 = vset.pattern.permute.xlu0 %v387
        %389 = vperm.xlu0 %388, %v378
        %v390 = vpop.permute.xlu0 %389
        %v391 = vlaneseq
        %v392 = vshrl.u32 %v391, 7
        %v393 = vadd.s32 %v392, 16
        %394 = vset.pattern.permute.xlu0 %v393
        %395 = vperm.xlu0 %394, %v378
        %v396 = vpop.permute.xlu0 %395
        %v397 = vlaneseq
        %v398 = vshrl.u32 %v397, 7
        %v399 = vadd.s32 %v398, 24
        %400 = vset.pattern.permute.xlu0 %v399
        %401 = vperm.xlu0 %400, %v378
        %v402 = vpop.permute.xlu0 %401
        %v403 = vlaneseq
        %v404 = vshrl.u32 %v403, 7
        %v405 = vadd.s32 %v404, 32
        %406 = vset.pattern.permute.xlu0 %v405
        %407 = vperm.xlu0 %406, %v378
        %v408 = vpop.permute.xlu0 %407
        %v409 = vlaneseq
        %v410 = vshrl.u32 %v409, 7
        %v411 = vadd.s32 %v410, 40
        %412 = vset.pattern.permute.xlu0 %v411
        %413 = vperm.xlu0 %412, %v378
        %v414 = vpop.permute.xlu0 %413
        %v415 = vlaneseq
        %v416 = vshrl.u32 %v415, 7
        %v417 = vadd.s32 %v416, 48
        %418 = vset.pattern.permute.xlu0 %v417
        %419 = vperm.xlu0 %418, %v378
        %v420 = vpop.permute.xlu0 %419
        %v421 = vlaneseq
        %v422 = vshrl.u32 %v421, 7
        %v423 = vadd.s32 %v422, 56
        %424 = vset.pattern.permute.xlu0 %v423
        %425 = vperm.xlu0 %424, %v378
        %v426 = vpop.permute.xlu0 %425
        %v427 = vmul.f32 %v384, %v208
        %v428 = vmul.f32 %v384, %v209
        %v429 = vmul.f32 %v390, %v210
        %v430 = vmul.f32 %v390, %v211
        %v431 = vmul.f32 %v396, %v212
        %v432 = vmul.f32 %v396, %v213
        %v433 = vmul.f32 %v402, %v214
        %v434 = vmul.f32 %v402, %v215
        %v435 = vmul.f32 %v408, %v216
        %v436 = vmul.f32 %v408, %v217
        %v437 = vmul.f32 %v414, %v218
        %v438 = vmul.f32 %v414, %v219
        %v439 = vmul.f32 %v420, %v220
        %v440 = vmul.f32 %v420, %v221
        %v441 = vmul.f32 %v426, %v222
        %v442 = vmul.f32 %v426, %v223
        %443 = vst [vmem:[%s207] sm:$0xff] %v427
        %444 = vst [vmem:[%s207 + $0x8] sm:$0xff] %v428
        %445 = vst [vmem:[%s207 + $0x10] sm:$0xff] %v429
        %446 = vst [vmem:[%s207 + $0x18] sm:$0xff] %v430
        %447 = vst [vmem:[%s207 + $0x20] sm:$0xff] %v431
        %448 = vst [vmem:[%s207 + $0x28] sm:$0xff] %v432
        %449 = vst [vmem:[%s207 + $0x30] sm:$0xff] %v433
        %450 = vst [vmem:[%s207 + $0x38] sm:$0xff] %v434
        %451 = vst [vmem:[%s207 + $0x40] sm:$0xff] %v435
        %452 = vst [vmem:[%s207 + $0x48] sm:$0xff] %v436
        %453 = vst [vmem:[%s207 + $0x50] sm:$0xff] %v437
        %454 = vst [vmem:[%s207 + $0x58] sm:$0xff] %v438
        %455 = vst [vmem:[%s207 + $0x60] sm:$0xff] %v439
        %456 = vst [vmem:[%s207 + $0x68] sm:$0xff] %v440
        %457 = vst [vmem:[%s207 + $0x70] sm:$0xff] %v441
        %458 = vst [vmem:[%s207 + $0x78] sm:$0xff] %v442
        %s459 = sand.u32 %s97, 1
        %s460 = scalar_lea.sflag [#allocation4], %s459
        %s461 = sand.u32 %s97, 1
        %s462 = smul.addr %s461, 128
        %s463 = scalar_lea.vmem [#allocation7], %s462
        // Predicated region
        $region41: #{tpu_custom_call.1} parent=31 // pred_check
          %p464 = pneg %p107
        $region42: #{tpu_custom_call.1} parent=31 // pred_check_branch
          %466 = sbr.rel (%p464) target = $region44
        $region43: #{tpu_custom_call.1} parent=31 // pred_region
          %468 = vsyncadd %s460, 0
          %s469 = smul.addr %s21, 16
          %s470 = smul.addr %s469, 8
          %s471 = scalar_lea.hbm %s3, %s470
          %s472 = sshll.u32 %s463, 4
          %s473 = int_to_ptr.vmem [resolvable:$true] %s472
          %s474 = sshll.u32 %s471, 4
          %s475 = int_to_ptr.hbm [resolvable:$true] %s474
          %480 = dma.vmem_to_hbm [thread:$0]  %s473, 2048, %s475, %s460, 256, 256, 16
        $region44: #{tpu_custom_call.1} parent=31 // pred_fallthru
          _
      $region32: #{tpu_custom_call.1} parent=5 // pred_fallthru
        _
      %p481 = scmp.le.s32.totalorder 2, %s16
      // Predicated region
      $region45: #{tpu_custom_call.1} parent=5 // pred_check
        %p482 = pneg %p481
      $region46: #{tpu_custom_call.1} parent=5 // pred_check_branch
        %484 = sbr.rel (%p482) target = $region48
      $region47: #{tpu_custom_call.1} parent=5 // pred_region
        %s485 = ssub.s32 %s16, 2
        // Predicated region
        $region49: #{tpu_custom_call.1} parent=47 // pred_check
          %p486 = pneg %p113
        $region50: #{tpu_custom_call.1} parent=47 // pred_check_branch
          %488 = sbr.rel (%p486) target = $region52
        $region51: #{tpu_custom_call.1} parent=47 // pred_region
          %s489 = sand.u32 %s98, 1
          %s490 = scalar_lea.sflag [#allocation4], %s489
          %s491 = sand.u32 %s98, 1
          %s492 = smul.addr %s491, 128
          %s493 = scalar_lea.vmem [#allocation7], %s492
          %495 = dma.done %s490, 2048
        $region52: #{tpu_custom_call.1} parent=47 // pred_fallthru
          _
      $region48: #{tpu_custom_call.1} parent=5 // pred_fallthru
        _
    $region6: #{tpu_custom_call.1} parent=1 // loop_footer
      %s20 = sadd.s32 1, %s16
    $region7: #{tpu_custom_call.1} parent=1 // loop_footer_branch
      %15 = sbr.rel target = $region3
    $region8: #{tpu_custom_call.1} parent=1 // loop_exit
      _
    %496 = vsyncpa [#allocation3], 1
    %s497 = scalar_lea.sflag [#allocation3], 1
    %498 = vsyncpa %s497, 1
    %499 = vsyncpa [#allocation6], 1
    %500 = vsyncpa [#allocation4], 1
    %s501 = scalar_lea.sflag [#allocation4], 1
    %502 = vsyncpa %s501, 1

</llo_original>
